<compile_context>
chip_gen: v7x
topology: tpu7x:2x2x1
jax: 0.10.0
libtpu: 0.0.40
codegen_flags: <defaults>
</compile_context>

<pallas_src>
import functools

import jax
import jax.numpy as jnp
from jax import lax
from jax.experimental import pallas as pl
from jax.experimental.pallas import tpu as pltpu


def _contrastive_loss_kernel(x1_ref, x2_ref, label_ref, out_ref, *, margin, eps, batch):
    tb = x1_ref.shape[0]                            # static tile row count
    x1 = x1_ref[...].astype(jnp.float32)            # (tb, D)
    x2 = x2_ref[...].astype(jnp.float32)            # (tb, D)

    dot = jnp.sum(x1 * x2, axis=1, keepdims=True)   # (tb, 1)
    n1sq = jnp.sum(x1 * x1, axis=1, keepdims=True)  # (tb, 1)
    n2sq = jnp.sum(x2 * x2, axis=1, keepdims=True)  # (tb, 1)

    # Ragged last tile: rows >= batch hold unspecified VMEM data.  Mask them to
    # safe values BEFORE the rsqrt so garbage can never produce Inf/NaN.
    row_id = lax.broadcasted_iota(jnp.int32, (tb, 1), 0)
    valid = (pl.program_id(0) * tb + row_id) < batch

    dot = jnp.where(valid, dot, 0.0)
    nprod = jnp.where(valid, n1sq * n2sq, 1.0)
    lbl = jnp.where(valid, label_ref[...], 0.0)     # (tb, 1) f32

    # cos = dot / max(||x1||*||x2||, eps) == dot * rsqrt(max(n1sq*n2sq, eps^2))
    inv_norm = lax.rsqrt(jnp.maximum(nprod, eps * eps))
    cos_sim = dot * inv_norm                        # invalid rows -> 0
    d = 1.0 - cos_sim                               # cosine distance

    loss = (1.0 - lbl) * d * d + lbl * jnp.square(jnp.maximum(margin - d, 0.0))
    loss = jnp.where(valid, loss, 0.0)              # invalid rows contribute 0

    # Per-tile partial sum -> distinct (1, 1) output block per grid step.
    out_ref[...] = jnp.sum(loss, axis=0, keepdims=True)


def contrastive_loss(output1, output2, label, margin=1.0, *, block_rows=None, eps=1e-8):
    """Pallas TPU implementation of ContrastiveLoss.forward.

    output1, output2: (B, D) float arrays (f32 or bf16).
    label:            (B,) or (B, 1) array (0 = similar pair, 1 = dissimilar).
    Returns a scalar float32 loss (mean over the batch).
    """
    B, D = output1.shape
    itemsize = jnp.dtype(output1.dtype).itemsize
    sub = 16 if itemsize == 2 else 8          # sublane multiple (bf16 packs 16 rows/vreg)

    # ---- scoped VMEM limit & tile budget (per-chip) -------------------------
    try:
        vmem_cap = int(pltpu.get_tpu_info().vmem_capacity_bytes)
    except Exception:
        vmem_cap = 64 * 1024 * 1024           # conservative (v7x per-TC) fallback
    # >=16 MiB headroom below physical, never above 64 MiB scoped.
    vmem_limit = max(32 * 1024 * 1024, min(vmem_cap - 16 * 1024 * 1024, 64 * 1024 * 1024))
    budget = (vmem_limit * 2) // 5            # sized allocations use ~40% of the limit

    # ---- per-row VMEM accounting (inputs, label padding, f32 temporaries) ---
    d_pad = ((D + 127) // 128) * 128                  # lane padding of feature tiles
    per_row = 2 * 2 * d_pad * itemsize                # x1/x2 tiles, double-buffered
    per_row += 2 * 128 * 4                            # (tb,1) f32 label block lane-pads to 128
    if itemsize != 4:
        per_row += 2 * d_pad * 4                      # in-kernel f32 casts of x1/x2
    per_row += 3 * d_pad * 4                          # x1*x2, x1*x1, x2*x2 full-tile temps
    fixed = 4 * 8 * 128 * 4                           # padded (1,1) output buffers etc.

    if block_rows is None:
        tb = max(sub, ((budget - fixed) // per_row) // sub * sub)
        tb = min(tb, 4096)
    else:
        tb = max(sub, (int(block_rows) // sub) * sub)
    b_ceil = ((B + sub - 1) // sub) * sub
    tb = min(tb, b_ceil)
    num_tiles = (B + tb - 1) // tb

    # ---- prepare inputs (features untouched: no padding, native dtype DMA) --
    label2d = jnp.asarray(label).reshape(B, 1).astype(jnp.float32)

    kernel = functools.partial(
        _contrastive_loss_kernel, margin=float(margin), eps=float(eps), batch=B
    )

    cost = pl.CostEstimate(
        flops=8 * B * D,
        transcendentals=B,                                      # one rsqrt per row
        bytes_accessed=2 * B * D * itemsize + 4 * B + 4 * num_tiles,
    )

    partial_sums = pl.pallas_call(
        kernel,
        out_shape=jax.ShapeDtypeStruct((num_tiles, 1), jnp.float32),
        grid=(num_tiles,),
        in_specs=[
            pl.BlockSpec((tb, D), lambda i: (i, 0)),
            pl.BlockSpec((tb, D), lambda i: (i, 0)),
            pl.BlockSpec((tb, 1), lambda i: (i, 0)),
        ],
        out_specs=pl.BlockSpec((1, 1), lambda i: (i, 0)),
        compiler_params=pltpu.CompilerParams(
            dimension_semantics=("parallel",),
            vmem_limit_bytes=int(vmem_limit),
        ),
        cost_estimate=cost,
    )(output1, output2, label2d)

    # Invalid/padded rows were zeroed in-kernel, so a plain sum / B is exact.
    return jnp.sum(partial_sums) / jnp.float32(B)


def _reference_loss(output1, output2, label, margin=1.0):
    # Pure-JAX reference mirroring the PyTorch semantics.
    x1 = output1.astype(jnp.float32)
    x2 = output2.astype(jnp.float32)
    dot = jnp.sum(x1 * x2, axis=1)
    n1 = jnp.linalg.norm(x1, axis=1)
    n2 = jnp.linalg.norm(x2, axis=1)
    cos_sim = dot / jnp.maximum(n1 * n2, 1e-8)
    d = 1.0 - cos_sim
    lbl = jnp.asarray(label).reshape(-1).astype(jnp.float32)
    return jnp.mean((1.0 - lbl) * d**2 + lbl * jnp.maximum(margin - d, 0.0) ** 2)


if __name__ == "__main__":
    key = jax.random.PRNGKey(0)
    k1, k2, k3 = jax.random.split(key, 3)

    # Case 1: small f32 embeddings (single tile, exact).
    B, D = 8, 32
    o1 = jax.random.normal(k1, (B, D), dtype=jnp.float32)
    o2 = jax.random.normal(k2, (B, D), dtype=jnp.float32)
    lbl = jax.random.bernoulli(k3, 0.5, (B,)).astype(jnp.float32)

    loss = jax.block_until_ready(contrastive_loss(o1, o2, lbl, margin=1.0))
    ref = jax.block_until_ready(_reference_loss(o1, o2, lbl, margin=1.0))
    assert jnp.allclose(loss, ref, atol=1e-5, rtol=1e-5), (loss, ref)

    # Case 2: ragged batch + bf16 features + multi-tile "parallel" grid
    # (exercises the no-pad ragged-last-tile masking and partial-sum output).
    B2, D2 = 44, 160
    o1b = jax.random.normal(k1, (B2, D2), dtype=jnp.float32).astype(jnp.bfloat16)
    o2b = jax.random.normal(k2, (B2, D2), dtype=jnp.float32).astype(jnp.bfloat16)
    lbl2 = jax.random.bernoulli(k3, 0.5, (B2,)).astype(jnp.float32)

    loss2 = jax.block_until_ready(
        contrastive_loss(o1b, o2b, lbl2, margin=1.0, block_rows=16)
    )
    ref2 = jax.block_until_ready(_reference_loss(o1b, o2b, lbl2, margin=1.0))
    assert jnp.allclose(loss2, ref2, atol=1e-4, rtol=1e-4), (loss2, ref2)

    # Case 3: auto tile sizing with B not a multiple of the sublane count
    # (single ragged block larger than the array's batch dim).
    B3, D3 = 25, 96
    o1c = jax.random.normal(k2, (B3, D3), dtype=jnp.float32)
    o2c = jax.random.normal(k3, (B3, D3), dtype=jnp.float32)
    lbl3 = jax.random.bernoulli(k1, 0.5, (B3,)).astype(jnp.float32)

    loss3 = jax.block_until_ready(contrastive_loss(o1c, o2c, lbl3, margin=1.0))
    ref3 = jax.block_until_ready(_reference_loss(o1c, o2c, lbl3, margin=1.0))
    assert jnp.allclose(loss3, ref3, atol=1e-5, rtol=1e-5), (loss3, ref3)

    print("KERNEL_OK")
</pallas_src>

<mosaic_0001>
module attributes {stable_mosaic.version = 11 : i64} {
  func.func @_contrastive_loss_kernel(%arg0: i32, %arg1: memref<8x32xf32, #tpu.memory_space<vmem>>, %arg2: memref<8x32xf32, #tpu.memory_space<vmem>>, %arg3: memref<8x1xf32, #tpu.memory_space<vmem>>, %arg4: memref<1x1xf32, #tpu.memory_space<vmem>>) attributes {dimension_semantics = [#tpu.dimension_semantics<parallel>], iteration_bounds = array<i64: 1>, scalar_prefetch = 0 : i64, scratch_operands = 0 : i64, tpu.core_type = #tpu.core_type<tc>, window_params = [{transform_indices = @transform_0, window_bounds = array<i64: 8, 32>}, {transform_indices = @transform_1, window_bounds = array<i64: 8, 32>}, {transform_indices = @transform_2, window_bounds = array<i64: 8, 1>}, {transform_indices = @transform_3, window_bounds = array<i64: 1, 1>}]} {
    %c0 = arith.constant 0 : index
    %c0_0 = arith.constant 0 : index
    %0 = vector.load %arg1[%c0, %c0_0] : memref<8x32xf32, #tpu.memory_space<vmem>>, vector<8x32xf32>
    %c0_1 = arith.constant 0 : index
    %c0_2 = arith.constant 0 : index
    %1 = vector.load %arg2[%c0_1, %c0_2] : memref<8x32xf32, #tpu.memory_space<vmem>>, vector<8x32xf32>
    %2 = arith.mulf %0, %1 : vector<8x32xf32>
    %cst = arith.constant dense<0.000000e+00> : vector<8xf32>
    %3 = vector.multi_reduction <add>, %2, %cst [1] : vector<8x32xf32> to vector<8xf32>
    %4 = vector.shape_cast %3 : vector<8xf32> to vector<8x1xf32>
    %5 = arith.mulf %0, %0 : vector<8x32xf32>
    %cst_3 = arith.constant dense<0.000000e+00> : vector<8xf32>
    %6 = vector.multi_reduction <add>, %5, %cst_3 [1] : vector<8x32xf32> to vector<8xf32>
    %7 = vector.shape_cast %6 : vector<8xf32> to vector<8x1xf32>
    %8 = arith.mulf %1, %1 : vector<8x32xf32>
    %cst_4 = arith.constant dense<0.000000e+00> : vector<8xf32>
    %9 = vector.multi_reduction <add>, %8, %cst_4 [1] : vector<8x32xf32> to vector<8xf32>
    %10 = vector.shape_cast %9 : vector<8xf32> to vector<8x1xf32>
    %11 = tpu.iota {dimensions = array<i32: 0>} : vector<8x1xi32>
    %c8_i32 = arith.constant 8 : i32
    %12 = arith.muli %arg0, %c8_i32 : i32
    %13 = vector.broadcast %12 : i32 to vector<8x1xi32>
    %14 = arith.addi %13, %11 : vector<8x1xi32>
    %c8_i32_5 = arith.constant 8 : i32
    %15 = vector.broadcast %c8_i32_5 : i32 to vector<8x1xi32>
    %16 = arith.cmpi slt, %14, %15 : vector<8x1xi32>
    %cst_6 = arith.constant 0.000000e+00 : f32
    %17 = vector.broadcast %cst_6 : f32 to vector<8x1xf32>
    %18 = arith.select %16, %4, %17 : vector<8x1xi1>, vector<8x1xf32>
    %19 = arith.mulf %7, %10 : vector<8x1xf32>
    %cst_7 = arith.constant 1.000000e+00 : f32
    %20 = vector.broadcast %cst_7 : f32 to vector<8x1xf32>
    %21 = arith.select %16, %19, %20 : vector<8x1xi1>, vector<8x1xf32>
    %c0_8 = arith.constant 0 : index
    %c0_9 = arith.constant 0 : index
    %22 = vector.load %arg3[%c0_8, %c0_9] : memref<8x1xf32, #tpu.memory_space<vmem>>, vector<8x1xf32>
    %cst_10 = arith.constant 0.000000e+00 : f32
    %23 = vector.broadcast %cst_10 : f32 to vector<8x1xf32>
    %24 = arith.select %16, %22, %23 : vector<8x1xi1>, vector<8x1xf32>
    %cst_11 = arith.constant 1.000000e-16 : f32
    %25 = vector.broadcast %cst_11 : f32 to vector<8x1xf32>
    %26 = arith.maximumf %21, %25 : vector<8x1xf32>
    %27 = math.rsqrt %26 : vector<8x1xf32>
    %28 = arith.mulf %18, %27 : vector<8x1xf32>
    %cst_12 = arith.constant 1.000000e+00 : f32
    %29 = vector.broadcast %cst_12 : f32 to vector<8x1xf32>
    %30 = arith.subf %29, %28 : vector<8x1xf32>
    %cst_13 = arith.constant 1.000000e+00 : f32
    %31 = vector.broadcast %cst_13 : f32 to vector<8x1xf32>
    %32 = arith.subf %31, %24 : vector<8x1xf32>
    %33 = arith.mulf %32, %30 : vector<8x1xf32>
    %34 = arith.mulf %33, %30 : vector<8x1xf32>
    %cst_14 = arith.constant 1.000000e+00 : f32
    %35 = vector.broadcast %cst_14 : f32 to vector<8x1xf32>
    %36 = arith.subf %35, %30 : vector<8x1xf32>
    %cst_15 = arith.constant 0.000000e+00 : f32
    %37 = vector.broadcast %cst_15 : f32 to vector<8x1xf32>
    %38 = arith.maximumf %36, %37 : vector<8x1xf32>
    %39 = arith.mulf %38, %38 : vector<8x1xf32>
    %40 = arith.mulf %24, %39 : vector<8x1xf32>
    %41 = arith.addf %34, %40 : vector<8x1xf32>
    %cst_16 = arith.constant 0.000000e+00 : f32
    %42 = vector.broadcast %cst_16 : f32 to vector<8x1xf32>
    %43 = arith.select %16, %41, %42 : vector<8x1xi1>, vector<8x1xf32>
    %cst_17 = arith.constant dense<0.000000e+00> : vector<1xf32>
    %44 = vector.multi_reduction <add>, %43, %cst_17 [0] : vector<8x1xf32> to vector<1xf32>
    %45 = vector.shape_cast %44 : vector<1xf32> to vector<1x1xf32>
    %c0_18 = arith.constant 0 : index
    %c0_19 = arith.constant 0 : index
    %46 = vector.load %arg4[%c0_18, %c0_19] : memref<1x1xf32, #tpu.memory_space<vmem>>, vector<1x1xf32>
    tpu.vector_store %arg4[%c0_18, %c0_19], %45 {strides = array<i32>} : memref<1x1xf32, #tpu.memory_space<vmem>>, vector<1x1xf32>,
    return
  }
  func.func @transform_0(%arg0: i32) -> (i32, i32) {
    %c0_i32 = arith.constant 0 : i32
    %c0_i32_0 = arith.constant 0 : i32
    return %arg0, %c0_i32 : i32, i32
  }
  func.func @transform_1(%arg0: i32) -> (i32, i32) {
    %c0_i32 = arith.constant 0 : i32
    %c0_i32_0 = arith.constant 0 : i32
    return %arg0, %c0_i32 : i32, i32
  }
  func.func @transform_2(%arg0: i32) -> (i32, i32) {
    %c0_i32 = arith.constant 0 : i32
    %c0_i32_0 = arith.constant 0 : i32
    return %arg0, %c0_i32 : i32, i32
  }
  func.func @transform_3(%arg0: i32) -> (i32, i32) {
    %c0_i32 = arith.constant 0 : i32
    %c0_i32_0 = arith.constant 0 : i32
    return %arg0, %c0_i32 : i32, i32
  }
}

</mosaic_0001>

<llo_original>
// kernel: tpu_custom_call.1
$region0: #{tpu_custom_call.1}
  #allocation0 [shape = 'u32[]', space=smem, size = 0x4, offset = 0x4, fixed_abs, tag = 'smem constant byte address 0x4 - core index']
  #allocation1 [shape = 'u32[144,128]{1,0:T(1,128)}', space=vmem, size = 0x12000, scoped, tag = 'internal scratch']
  %s0 = inlined_call_operand.vmem [shape: f32[8,32], index: 0, kind: input, shape index: {}]
  %s1 = inlined_call_operand.hbm [shape: f32[8,32], index: 1, kind: input, shape index: {}]
  %s2 = inlined_call_operand.vmem [shape: f32[8,1], index: 2, kind: input, shape index: {}]
  %s3 = inlined_call_operand.hbm [shape: f32[1,1], index: 3, kind: output, shape index: {}]
  %s4 = sld [smem:[#allocation0]]
  $region26: #{tpu_custom_call.1} parent=0
    _
  %s6 = ssub.s32 1, %s4
  %s7 = scalar_select 0, %s6, %s4
  $region1: #{tpu_custom_call.1} parent=0
    #allocation2 [shape = 'u8[4096]{0}', space=vmem, size = 0x1000, scoped, tag = 'input window, operand 1, single buffered']
    #allocation3 [shape = 's32[1]{0}', space=sflag, size = 0x4, scoped, tag = 'scoped memory for tpu_custom_call.1']
    #allocation4 [shape = 's32[1]{0}', space=sflag, size = 0x4, scoped, tag = 'scoped memory for tpu_custom_call.1']
    #allocation5 [shape = 'u8[512]{0}', space=vmem, size = 0x400, scoped, tag = 'output window, operand 0, single buffered']
    %8 = vsyncpa [#allocation3], 0
    %9 = vsyncpa [#allocation4], 0
    // Predicated region
    $region2: #{tpu_custom_call.1} parent=1 // pred_check
      _
    $region3: #{tpu_custom_call.1} parent=1 // pred_check_branch
      %11 = sbr.rel (0) target = $region5
    $region4: #{tpu_custom_call.1} parent=1 // pred_region
      _
    $region5: #{tpu_custom_call.1} parent=1 // pred_fallthru
      _
    // Predicated region
    $region6: #{tpu_custom_call.1} parent=1 // pred_check
      _
    $region7: #{tpu_custom_call.1} parent=1 // pred_check_branch
      %13 = sbr.rel (0) target = $region9
    $region8: #{tpu_custom_call.1} parent=1 // pred_region
      %s15 = ssub.s32 128, 128
      %16 = vsyncadd [#allocation3], %s15
      %s18 = sshll.u32 [#allocation2], 4
      %s19 = int_to_ptr.vmem [resolvable:$true] %s18
      %21 = dma.hbm_to_vmem [thread:$0]  %s1, 128, %s19, [#allocation3]
    $region9: #{tpu_custom_call.1} parent=1 // pred_fallthru
      _
    // Predicated region
    $region10: #{tpu_custom_call.1} parent=1 // pred_check
      _
    $region11: #{tpu_custom_call.1} parent=1 // pred_check_branch
      %23 = sbr.rel (0) target = $region13
    $region12: #{tpu_custom_call.1} parent=1 // pred_region
      _
    $region13: #{tpu_custom_call.1} parent=1 // pred_fallthru
      _
    // Predicated region
    $region14: #{tpu_custom_call.1} parent=1 // pred_check
      _
    $region15: #{tpu_custom_call.1} parent=1 // pred_check_branch
      %25 = sbr.rel (0) target = $region17
    $region16: #{tpu_custom_call.1} parent=1 // pred_region
      %26 = dma.done [#allocation3], 128
    $region17: #{tpu_custom_call.1} parent=1 // pred_fallthru
      _
    %v27 = vld [vmem:[%s0] sm:$0xff]
    %v28 = vld [vmem:[#allocation2] sm:$0xff]
    %v29 = vmul.f32 %v27, %v28
    %vm30 = vcmask 261120
    %v31 = vsel %vm30, %v29, 0.0
    %32 = vadd.xlane.f32.xlu0 %v31
    %v33 = vpop.xlane.xlu0 %32
    %v34 = vmul.f32 %v27, %v27
    %v35 = vsel %vm30, %v34, 0.0
    %36 = vadd.xlane.f32.xlu0 %v35
    %v37 = vpop.xlane.xlu0 %36
    %v38 = vmul.f32 %v28, %v28
    %v39 = vsel %vm30, %v38, 0.0
    %40 = vadd.xlane.f32.xlu0 %v39
    %v41 = vpop.xlane.xlu0 %40
    %v42 = vlaneseq
    %v43 = vshrl.u32 %v42, 7
    %s44 = smul.u32 0, 8
    %v45 = vstv %s44
    %v46 = vadd.s32 %v45, %v43
    %vm47 = vcmp.lt.s32.totalorder %v46, 8
    %v48 = vsel %vm47, %v33, 0.0
    %v49 = vmul.f32 %v37, %v41
    %v50 = vsel %vm47, %v49, 1.0
    %v51 = vld [vmem:[%s2] sm:$0xff]
    %v52 = vsel %vm47, %v51, 0.0
    %v53 = vmax.f32 %v50, 1e-16
    %v54 = vrsqrt.pop %v53
    %v55 = vmul.f32 %v48, %v54
    %v56 = vsub.f32 1.0, %v55
    %v57 = vsub.f32 1.0, %v52
    %v58 = vmul.f32 %v57, %v56
    %v59 = vmul.f32 %v58, %v56
    %v60 = vsub.f32 1.0, %v56
    %v61 = vmax.f32 %v60, 0.0
    %v62 = vmul.f32 %v61, %v61
    %v63 = vmul.f32 %v52, %v62
    %v64 = vadd.f32 %v59, %v63
    %v65 = vsel %vm47, %v64, 0.0
    %vm66 = vcmask 7168
    %v67 = vsel %vm66, %v65, 0.0
    %v68 = vrot.slane %v67, 4
    %v69 = vadd.f32 %v67, %v68
    %v70 = vrot.slane %v69, 2
    %v71 = vadd.f32 %v69, %v70
    %v72 = vrot.slane %v71, 1
    %v73 = vadd.f32 %v71, %v72
    %vm74 = vcmask 0
    %75 = vst.msk [vmem:[#allocation5] sm:$0x1] %vm74, %v73
    // Predicated region
    $region18: #{tpu_custom_call.1} parent=1 // pred_check
      _
    $region19: #{tpu_custom_call.1} parent=1 // pred_check_branch
      %77 = sbr.rel (0) target = $region21
    $region20: #{tpu_custom_call.1} parent=1 // pred_region
      %s79 = ssub.s32 16, 16
      %80 = vsyncadd [#allocation4], %s79
      %s82 = sshll.u32 [#allocation5], 4
      %s83 = int_to_ptr.vmem [resolvable:$true] %s82
      %85 = dma.vmem_to_hbm [thread:$0]  %s83, 16, %s3, [#allocation4]
    $region21: #{tpu_custom_call.1} parent=1 // pred_fallthru
      _
    // Predicated region
    $region22: #{tpu_custom_call.1} parent=1 // pred_check
      _
    $region23: #{tpu_custom_call.1} parent=1 // pred_check_branch
      %87 = sbr.rel (0) target = $region25
    $region24: #{tpu_custom_call.1} parent=1 // pred_region
      %88 = dma.done [#allocation4], 16
    $region25: #{tpu_custom_call.1} parent=1 // pred_fallthru
      _
    %89 = vsyncpa [#allocation3], 1
    %90 = vsyncpa [#allocation4], 1

</llo_original>
